<compile_context>
chip_gen: v7x
topology: tpu7x:2x2x1
jax: 0.10.0
libtpu: 0.0.40
codegen_flags: <defaults>
</compile_context>

<pallas_src>
import jax
import jax.numpy as jnp
from jax.experimental import pallas as pl
from jax.experimental.pallas import tpu as pltpu

_LANE = 128
_SUBLANE = 8


def logreg_kernel(x_ref, w_ref, b_ref, o_ref):
    # x_ref: (2, TS, 128) VMEM, w_ref: (2,) SMEM, b_ref: (1,) SMEM,
    # o_ref: (TS, 128) VMEM
    w0 = w_ref[0]
    w1 = w_ref[1]
    b = b_ref[0]

    x0 = x_ref[0].astype(jnp.float32)  # (TS, 128) dense vregs
    x1 = x_ref[1].astype(jnp.float32)  # (TS, 128)

    # Linear: pure VPU FMAs (K=2, N=1 -> no MXU, no cross-lane reduce).
    z = x0 * w0 + x1 * w1 + b  # (TS, 128), f32

    # Sigmoid via a single EUP tanh push (exact to f32 precision).
    sig = 0.5 * jnp.tanh(0.5 * z) + 0.5
    o_ref[...] = sig.astype(o_ref.dtype)


def _round_up(n, m):
    return ((n + m - 1) // m) * m


def logistic_regression_forward(x, weight, bias, *, block_rows=512):
    """x: (B, 2), weight: (1, 2), bias: (1,) -> (B, 1). Matches Linear(2,1)+Sigmoid."""
    B, F = x.shape
    assert F == 2

    # Batch re-laid out as (nblk, 128): 128 on lanes, nblk rows on sublanes.
    nblk = pl.cdiv(B, _LANE)
    # Tile height in sublane rows: multiple of 8, capped so large batches get
    # multiple grid steps (pipelining + v7x dual-TC sharding), ~1-2 MiB/step.
    ts = min(_round_up(block_rows, _SUBLANE), _round_up(nblk, _SUBLANE))
    nblk_pad = _round_up(nblk, ts)
    b_pad = nblk_pad * _LANE

    # Layout plumbing: feature-major planes, zero-padded tail (keeps padded
    # lanes finite; they are masked/sliced away afterwards).
    x_t = x.T  # (2, B)
    if b_pad != B:
        x_t = jnp.pad(x_t, ((0, 0), (0, b_pad - B)))
    x3 = x_t.reshape(F, nblk_pad, _LANE)

    # Parameters as flat scalars for SMEM.
    w_s = weight.reshape(F).astype(jnp.float32)  # (2,)
    b_s = bias.reshape(1).astype(jnp.float32)    # (1,)

    grid = (nblk_pad // ts,)

    out = pl.pallas_call(
        logreg_kernel,
        out_shape=jax.ShapeDtypeStruct((nblk_pad, _LANE), x.dtype),
        grid_spec=pl.GridSpec(
            grid=grid,
            in_specs=[
                pl.BlockSpec((F, ts, _LANE), lambda i: (0, i, 0)),        # x planes (VMEM)
                pl.BlockSpec(memory_space=pltpu.MemorySpace.SMEM),        # weight scalars
                pl.BlockSpec(memory_space=pltpu.MemorySpace.SMEM),        # bias scalar
            ],
            out_specs=pl.BlockSpec((ts, _LANE), lambda i: (i, 0)),        # dense output tile
        ),
        compiler_params=pltpu.CompilerParams(
            dimension_semantics=("parallel",),
        ),
        cost_estimate=pl.CostEstimate(
            flops=5 * B,              # 2 mul + 2 add + affine fold per element
            transcendentals=B,        # one tanh per element
            bytes_accessed=12 * B,    # 8 B in (two f32 features) + 4 B out
        ),
    )(x3, w_s, b_s)

    # Back to the PyTorch output layout (B, 1), dropping batch padding.
    return out.reshape(b_pad)[:B].reshape(B, 1)


if __name__ == "__main__":
    key = jax.random.PRNGKey(0)
    kx, kw, kb = jax.random.split(key, 3)

    batch, in_features, out_features = 8, 2, 1

    # Deterministic parameter init, mirroring PyTorch's default Linear init
    # U(-1/sqrt(fan_in), 1/sqrt(fan_in)).
    bound = 1.0 / jnp.sqrt(jnp.float32(in_features))
    weight = jax.random.uniform(
        kw, (out_features, in_features), jnp.float32, -bound, bound
    )
    bias = jax.random.uniform(kb, (out_features,), jnp.float32, -bound, bound)

    x = jax.random.normal(kx, (batch, in_features), jnp.float32)

    out = logistic_regression_forward(x, weight, bias)
    out = jax.block_until_ready(out)

    # Reference check in plain JAX.
    ref = jax.nn.sigmoid(x @ weight.T + bias)
    assert out.shape == (batch, out_features)
    assert jnp.allclose(out, ref, atol=1e-5, rtol=1e-5), "mismatch vs reference"

    print("KERNEL_OK")
</pallas_src>

<mosaic_0001>
module attributes {stable_mosaic.version = 11 : i64} {
  func.func @logreg_kernel(%arg0: i32, %arg1: memref<2x8x128xf32, #tpu.memory_space<vmem>>, %arg2: memref<2xf32, #tpu.memory_space<smem>>, %arg3: memref<1xf32, #tpu.memory_space<smem>>, %arg4: memref<8x128xf32, #tpu.memory_space<vmem>>) attributes {dimension_semantics = [#tpu.dimension_semantics<parallel>], iteration_bounds = array<i64: 1>, scalar_prefetch = 0 : i64, scratch_operands = 0 : i64, tpu.core_type = #tpu.core_type<tc>, window_params = [{transform_indices = @transform_0, window_bounds = array<i64: 2, 8, 128>}, {transform_indices = @transform_1, window_bounds = array<i64: 2>}, {transform_indices = @transform_2, window_bounds = array<i64: 1>}, {transform_indices = @transform_3, window_bounds = array<i64: 8, 128>}]} {
    %c0 = arith.constant 0 : index
    %0 = memref.load %arg2[%c0] : memref<2xf32, #tpu.memory_space<smem>>
    %c1 = arith.constant 1 : index
    %1 = memref.load %arg2[%c1] : memref<2xf32, #tpu.memory_space<smem>>
    %c0_0 = arith.constant 0 : index
    %2 = memref.load %arg3[%c0_0] : memref<1xf32, #tpu.memory_space<smem>>
    %c0_1 = arith.constant 0 : index
    %c0_2 = arith.constant 0 : index
    %c0_3 = arith.constant 0 : index
    %3 = vector.load %arg1[%c0_1, %c0_2, %c0_3] : memref<2x8x128xf32, #tpu.memory_space<vmem>>, vector<1x8x128xf32>
    %4 = vector.shape_cast %3 : vector<1x8x128xf32> to vector<8x128xf32>
    %c1_4 = arith.constant 1 : index
    %c0_5 = arith.constant 0 : index
    %c0_6 = arith.constant 0 : index
    %5 = vector.load %arg1[%c1_4, %c0_5, %c0_6] : memref<2x8x128xf32, #tpu.memory_space<vmem>>, vector<1x8x128xf32>
    %6 = vector.shape_cast %5 : vector<1x8x128xf32> to vector<8x128xf32>
    %7 = vector.broadcast %0 : f32 to vector<8x128xf32>
    %8 = arith.mulf %4, %7 : vector<8x128xf32>
    %9 = vector.broadcast %1 : f32 to vector<8x128xf32>
    %10 = arith.mulf %6, %9 : vector<8x128xf32>
    %11 = arith.addf %8, %10 : vector<8x128xf32>
    %12 = vector.broadcast %2 : f32 to vector<8x128xf32>
    %13 = arith.addf %11, %12 : vector<8x128xf32>
    %cst = arith.constant 5.000000e-01 : f32
    %14 = vector.broadcast %cst : f32 to vector<8x128xf32>
    %15 = arith.mulf %14, %13 : vector<8x128xf32>
    %16 = math.tanh %15 : vector<8x128xf32>
    %cst_7 = arith.constant 5.000000e-01 : f32
    %17 = vector.broadcast %cst_7 : f32 to vector<8x128xf32>
    %18 = arith.mulf %17, %16 : vector<8x128xf32>
    %cst_8 = arith.constant 5.000000e-01 : f32
    %19 = vector.broadcast %cst_8 : f32 to vector<8x128xf32>
    %20 = arith.addf %18, %19 : vector<8x128xf32>
    %c0_9 = arith.constant 0 : index
    %c0_10 = arith.constant 0 : index
    %21 = vector.load %arg4[%c0_9, %c0_10] : memref<8x128xf32, #tpu.memory_space<vmem>>, vector<8x128xf32>
    tpu.vector_store %arg4[%c0_9, %c0_10], %20 {strides = array<i32>} : memref<8x128xf32, #tpu.memory_space<vmem>>, vector<8x128xf32>,
    return
  }
  func.func @transform_0(%arg0: i32) -> (i32, i32, i32) {
    %c0_i32 = arith.constant 0 : i32
    %c0_i32_0 = arith.constant 0 : i32
    %c0_i32_1 = arith.constant 0 : i32
    return %c0_i32, %arg0, %c0_i32_0 : i32, i32, i32
  }
  func.func @transform_1(%arg0: i32) -> i32 {
    %c0_i32 = arith.constant 0 : i32
    %c0_i32_0 = arith.constant 0 : i32
    return %c0_i32 : i32
  }
  func.func @transform_2(%arg0: i32) -> i32 {
    %c0_i32 = arith.constant 0 : i32
    %c0_i32_0 = arith.constant 0 : i32
    return %c0_i32 : i32
  }
  func.func @transform_3(%arg0: i32) -> (i32, i32) {
    %c0_i32 = arith.constant 0 : i32
    %c0_i32_0 = arith.constant 0 : i32
    return %arg0, %c0_i32 : i32, i32
  }
}

</mosaic_0001>

<llo_original>
// kernel: tpu_custom_call.1
$region0: #{tpu_custom_call.1}
  #allocation0 [shape = 'u32[]', space=smem, size = 0x4, offset = 0x4, fixed_abs, tag = 'smem constant byte address 0x4 - core index']
  #allocation1 [shape = 'u32[144,128]{1,0:T(1,128)}', space=vmem, size = 0x12000, scoped, tag = 'internal scratch']
  #allocation2 [shape = 'f32[1]{0:T(128)S(6)}', space=smem, size = 0x200, scoped, tag = 'scoped memory for tpu_custom_call.1']
  %s0 = inlined_call_operand.hbm [shape: f32[2,8,128], index: 0, kind: input, shape index: {}]
  %s1 = inlined_call_operand.vmem [shape: f32[2], index: 1, kind: input, shape index: {}]
  %s2 = inlined_call_operand.<no memory space> [shape: f32[1], index: 2, kind: input, shape index: {}]
  %s3 = inlined_call_operand.hbm [shape: f32[8,128], index: 3, kind: output, shape index: {}]
  %s4 = sld [smem:[#allocation0]]
  $region30: #{tpu_custom_call.1} parent=0
    _
  %s6 = ssub.s32 1, %s4
  %s7 = scalar_select 0, %s6, %s4
  %8 = sst [smem:[#allocation2]] %s2
  $region1: #{tpu_custom_call.1} parent=0
    #allocation3 [shape = 'u8[8192]{0}', space=vmem, size = 0x2000, scoped, tag = 'input window, operand 0, single buffered']
    #allocation4 [shape = 's32[1]{0}', space=sflag, size = 0x4, scoped, tag = 'scoped memory for tpu_custom_call.1']
    #allocation5 [shape = 's32[1]{0}', space=sflag, size = 0x4, scoped, tag = 'scoped memory for tpu_custom_call.1']
    #allocation6 [shape = 's32[1]{0}', space=sflag, size = 0x4, scoped, tag = 'scoped memory for tpu_custom_call.1']
    #allocation7 [shape = 'u8[512]{0}', space=smem, size = 0x200, scoped, tag = 'input window, operand 1, single buffered']
    #allocation8 [shape = 'u8[4096]{0}', space=vmem, size = 0x1000, scoped, tag = 'output window, operand 0, single buffered']
    %9 = vsyncpa [#allocation4], 0
    %10 = vsyncpa [#allocation6], 0
    %11 = vsyncpa [#allocation5], 0
    // Predicated region
    $region2: #{tpu_custom_call.1} parent=1 // pred_check
      _
    $region3: #{tpu_custom_call.1} parent=1 // pred_check_branch
      %13 = sbr.rel (0) target = $region5
    $region4: #{tpu_custom_call.1} parent=1 // pred_region
      %s15 = ssub.s32 256, 256
      %16 = vsyncadd [#allocation4], %s15
      %s17 = sshll.u32 [#allocation3], 4
      %s18 = int_to_ptr.vmem [resolvable:$true] %s17
      %23 = dma.hbm_to_vmem [thread:$0]  %s0, 256, %s18, [#allocation4], 128, 128, 8
    $region5: #{tpu_custom_call.1} parent=1 // pred_fallthru
      _
    // Predicated region
    $region6: #{tpu_custom_call.1} parent=1 // pred_check
      _
    $region7: #{tpu_custom_call.1} parent=1 // pred_check_branch
      %25 = sbr.rel (0) target = $region9
    $region8: #{tpu_custom_call.1} parent=1 // pred_region
      %s27 = ssub.s32 16, 16
      %28 = vsyncadd [#allocation6], %s27
      %s30 = sshll.u32 %s1, 4
      %s31 = int_to_ptr.vmem [resolvable:$true] %s30
      %33 = dma.vmem_to_smem %s31, 16, [#allocation7], [#allocation6]
    $region9: #{tpu_custom_call.1} parent=1 // pred_fallthru
      _
    // Predicated region
    $region10: #{tpu_custom_call.1} parent=1 // pred_check
      _
    $region11: #{tpu_custom_call.1} parent=1 // pred_check_branch
      %35 = sbr.rel (0) target = $region13
    $region12: #{tpu_custom_call.1} parent=1 // pred_region
      _
    $region13: #{tpu_custom_call.1} parent=1 // pred_fallthru
      _
    // Predicated region
    $region14: #{tpu_custom_call.1} parent=1 // pred_check
      _
    $region15: #{tpu_custom_call.1} parent=1 // pred_check_branch
      %37 = sbr.rel (0) target = $region17
    $region16: #{tpu_custom_call.1} parent=1 // pred_region
      %38 = dma.done [#allocation4], 256
    $region17: #{tpu_custom_call.1} parent=1 // pred_fallthru
      _
    // Predicated region
    $region18: #{tpu_custom_call.1} parent=1 // pred_check
      _
    $region19: #{tpu_custom_call.1} parent=1 // pred_check_branch
      %40 = sbr.rel (0) target = $region21
    $region20: #{tpu_custom_call.1} parent=1 // pred_region
      %41 = dma.done [#allocation6], 16
    $region21: #{tpu_custom_call.1} parent=1 // pred_fallthru
      _
    %42 = sfence
    %s43 = sld [smem:[#allocation7]]
    %s44 = sld [smem:[#allocation7 + $0x1]]
    %s45 = sld [smem:[#allocation2]]
    %v46 = vld [vmem:[#allocation3] sm:$0xff]
    %s47 = scalar_lea.vmem [#allocation3], 8
    %v48 = vld [vmem:[%s47] sm:$0xff]
    %v49 = vstv %s43
    %v50 = vmul.f32 %v46, %v49
    %v51 = vstv %s44
    %v52 = vmul.f32 %v48, %v51
    %v53 = vadd.f32 %v50, %v52
    %v54 = vstv %s45
    %v55 = vadd.f32 %v53, %v54
    %v56 = vmul.f32 %v55, 0.5
    %v57 = vtanh.pop %v56
    %v58 = vmul.f32 %v57, 0.5
    %v59 = vadd.f32 %v58, 0.5
    %60 = vst [vmem:[#allocation8] sm:$0xff] %v59
    // Predicated region
    $region22: #{tpu_custom_call.1} parent=1 // pred_check
      _
    $region23: #{tpu_custom_call.1} parent=1 // pred_check_branch
      %62 = sbr.rel (0) target = $region25
    $region24: #{tpu_custom_call.1} parent=1 // pred_region
      %s64 = ssub.s32 128, 128
      %65 = vsyncadd [#allocation5], %s64
      %s67 = sshll.u32 [#allocation8], 4
      %s68 = int_to_ptr.vmem [resolvable:$true] %s67
      %70 = dma.vmem_to_hbm [thread:$0]  %s68, 128, %s3, [#allocation5]
    $region25: #{tpu_custom_call.1} parent=1 // pred_fallthru
      _
    // Predicated region
    $region26: #{tpu_custom_call.1} parent=1 // pred_check
      _
    $region27: #{tpu_custom_call.1} parent=1 // pred_check_branch
      %72 = sbr.rel (0) target = $region29
    $region28: #{tpu_custom_call.1} parent=1 // pred_region
      %73 = dma.done [#allocation5], 128
    $region29: #{tpu_custom_call.1} parent=1 // pred_fallthru
      _
    %74 = vsyncpa [#allocation4], 1
    %75 = vsyncpa [#allocation5], 1
    %76 = vsyncpa [#allocation6], 1

</llo_original>
